<compile_context>
chip_gen: v7x
topology: tpu7x:2x2x1
jax: 0.10.0
libtpu: 0.0.40
codegen_flags: <defaults>
</compile_context>

<pallas_src>
import jax
import jax.numpy as jnp
import numpy as np
from jax import lax
from jax.experimental import pallas as pl
from jax.experimental.pallas import tpu as pltpu

# ---------------- static shape config (small synthetic sizes) ----------------
N = 2        # batch
C_IN = 12    # input channels (fixed by the module)
C1 = 192     # conv1 out channels
C2 = 192     # conv2 out channels
L = 64       # input sequence length

# derived lengths (PyTorch conv/pool formulas)
L_CONV1 = (L + 2 * 1 - 3) // 2 + 1          # 32
L_POOL1 = (L_CONV1 - 3) // 2 + 1            # 15
L_CONV2 = (L_POOL1 + 2 * 1 - 3) // 2 + 1    # 8
L_POOL2 = (L_CONV2 - 3) // 2 + 1            # 3

KB = L_CONV1 // 4          # rows per mod-4 residue block, per batch element (8)
RB = N * KB                # rows per residue block, batch-stacked (16)
KCOL = 3 * C_IN + 1        # im2col width + ones column for the folded bias (37)

assert L_CONV1 % 4 == 0 and KB == L_CONV2 and L_POOL1 == 2 * KB - 1


def client_ptb_kernel(xcol_ref, w1_ref, w2_ref, b2_ref, out_ref):
    """Whole batch in one grid step; everything after conv1 stays in vregs.

    xcol_ref : (4*RB, KCOL) = (64, 37)  im2col'd conv1 input (+ ones column),
               rows ordered (residue r, batch n, k) with conv1 output i = 4k+r
    w1_ref   : (KCOL, C1)   tap-major conv1 weight with the bias as last row
    w2_ref   : (3, C1, C2)  conv2 taps
    b2_ref   : (1, C2)
    out_ref  : (N*L_POOL2, C2) = (6, 192)
    """
    # ---- conv1 (+bias folded in) as one MXU matmul, ReLU on the VPU ----
    a1 = jnp.dot(xcol_ref[...], w1_ref[...], preferred_element_type=jnp.float32)
    a1 = jnp.maximum(a1, 0.0)                                   # (64, C1)

    # residue blocks: A_r rows = conv1 outputs i == r (mod 4), batch-stacked
    A0 = a1[0 * RB:1 * RB, :]
    A1 = a1[1 * RB:2 * RB, :]
    A2 = a1[2 * RB:3 * RB, :]
    A3 = a1[3 * RB:4 * RB, :]

    # drop1: Dropout(0.4) is identity at inference time.
    # TODO(synk): training-mode stochastic dropout (pltpu.prng_*) not implemented.

    # ---- maxpool1 (k=3, s=2), entirely in vregs ----
    # even pooled rows pool1[2k] = max(a1[4k], a1[4k+1], a1[4k+2])  == conv2 center tap
    tap1 = jnp.maximum(jnp.maximum(A0, A1), A2)                 # (RB, C1)

    # odd pooled rows pool1[2k+1] = max(a1[4k+2], a1[4k+3], a1[4k+4]), k=0..KB-2;
    # row k=KB-1 of each batch is zeroed and doubles as conv2's right zero-pad.
    a0_up = a1[1:RB + 1, :]                                     # A0 shifted up one row
    podd = jnp.maximum(jnp.maximum(A2, A3), a0_up)
    row = lax.broadcasted_iota(jnp.int32, (RB, C1), 0)
    tap2 = jnp.where(row % KB == KB - 1, 0.0, podd)             # pool1[2j+1]

    # conv2 left tap pool1[2j-1]: shift tap2 down one row with a zero row on top
    # (rows 0 and KB of the stack become the left zero-pad automatically).
    tap0 = jnp.concatenate(
        [jnp.zeros((1, C1), jnp.float32), tap2[:RB - 1, :]], axis=0)

    # ---- conv2 (k=3, s=2, p=1): three K=192 MXU matmuls, batch-stacked M=16 ----
    acc = jnp.dot(tap0, w2_ref[0], preferred_element_type=jnp.float32)
    acc = acc + jnp.dot(tap1, w2_ref[1], preferred_element_type=jnp.float32)
    acc = acc + jnp.dot(tap2, w2_ref[2], preferred_element_type=jnp.float32)
    a2 = jnp.maximum(acc + b2_ref[...], 0.0)                    # (RB, C2), ReLU

    # ---- maxpool2 (k=3, s=2) in vregs; single dense (6, C2) output store ----
    rows = []
    for n in range(N):
        base = n * L_CONV2
        for p in range(L_POOL2):
            r = base + 2 * p
            rows.append(jnp.maximum(
                jnp.maximum(a2[r:r + 1, :], a2[r + 1:r + 2, :]),
                a2[r + 2:r + 3, :]))
    out_ref[...] = jnp.concatenate(rows, axis=0)                # (6, C2)


def prepare_params(w1, b1, w2, b2):
    """One-time weight/bias re-layout (hoisted out of the per-call path)."""
    w1cat = jnp.transpose(w1, (2, 1, 0)).reshape(3 * C_IN, C1)   # tap-major (36, C1)
    w1cat = jnp.concatenate([w1cat, b1.reshape(1, C1)], axis=0)  # bias row -> (37, C1)
    w2k = jnp.transpose(w2, (2, 1, 0))                           # (3, C1, C2)
    b2r = b2.reshape(1, C2)
    return w1cat, w2k, b2r


@jax.jit
def client_ptb_forward(x_ncl, w1cat, w2k, b2r):
    """x_ncl: (N, 12, L) float32 NCL; weights pre-laid-out by prepare_params()."""
    # ---- wrapper-side layout plumbing for x (pure reshapes/slices) ----
    x = jnp.transpose(x_ncl, (0, 2, 1))                    # (N, L, C_IN)
    xp = jnp.pad(x, ((0, 0), (1, 1), (0, 0)))              # (N, L+2, C_IN)

    # im2col: conv1 output i uses padded rows 2i, 2i+1, 2i+2; ones column folds b1
    t0 = xp[:, 0:2 * L_CONV1:2, :]
    t1 = xp[:, 1:2 * L_CONV1 + 1:2, :]
    t2 = xp[:, 2:2 * L_CONV1 + 2:2, :]
    ones = jnp.ones((N, L_CONV1, 1), jnp.float32)
    xcol = jnp.concatenate([t0, t1, t2, ones], axis=-1)    # (N, L_CONV1, KCOL)

    # reorder rows: natural i = 4k + r  ->  kernel row r*RB + n*KB + k
    xcol = xcol.reshape(N, KB, 4, KCOL)                    # [n, k, r, :]
    xcol = jnp.transpose(xcol, (2, 0, 1, 3))               # [r, n, k, :]
    xcol = xcol.reshape(4 * RB, KCOL)                      # (64, 37)

    out = pl.pallas_call(
        client_ptb_kernel,
        out_shape=jax.ShapeDtypeStruct((N * L_POOL2, C2), jnp.float32),
        grid_spec=pltpu.PrefetchScalarGridSpec(
            num_scalar_prefetch=0,
            grid=(1,),
            in_specs=[
                pl.BlockSpec((4 * RB, KCOL), lambda i: (0, 0)),
                pl.BlockSpec((KCOL, C1), lambda i: (0, 0)),
                pl.BlockSpec((3, C1, C2), lambda i: (0, 0, 0)),
                pl.BlockSpec((1, C2), lambda i: (0, 0)),
            ],
            out_specs=pl.BlockSpec((N * L_POOL2, C2), lambda i: (0, 0)),
        ),
        compiler_params=pltpu.CompilerParams(
            dimension_semantics=("arbitrary",)),
    )(xcol, w1cat, w2k, b2r)

    out = out.reshape(N, L_POOL2, C2)
    return jnp.transpose(out, (0, 2, 1))                   # (N, C2, L_POOL2) NCL


def ref_forward(x_ncl, w1, b1, w2, b2):
    """Pure-JAX reference matching PyTorch semantics (eval mode)."""
    def conv1d(x, w, b, stride, pad):
        y = lax.conv_general_dilated(
            x, w, window_strides=(stride,), padding=[(pad, pad)],
            dimension_numbers=('NCH', 'OIH', 'NCH'))
        return y + b[None, :, None]

    def maxpool(x, k, s):
        return lax.reduce_window(x, -jnp.inf, lax.max,
                                 window_dimensions=(1, 1, k),
                                 window_strides=(1, 1, s),
                                 padding='VALID')

    y = jax.nn.relu(conv1d(x_ncl, w1, b1, 2, 1))
    y = maxpool(y, 3, 2)
    y = jax.nn.relu(conv1d(y, w2, b2, 2, 1))
    y = maxpool(y, 3, 2)
    return y


if __name__ == "__main__":
    key = jax.random.PRNGKey(0)
    kx, k1, kb1, k2, kb2 = jax.random.split(key, 5)

    x = jax.random.normal(kx, (N, C_IN, L), dtype=jnp.float32)

    # kaiming_normal_(mode='fan_out', nonlinearity='relu'): std = sqrt(2 / (C_out * k))
    std1 = (2.0 / (C1 * 3)) ** 0.5
    std2 = (2.0 / (C2 * 3)) ** 0.5
    w1 = std1 * jax.random.normal(k1, (C1, C_IN, 3), dtype=jnp.float32)
    w2 = std2 * jax.random.normal(k2, (C2, C1, 3), dtype=jnp.float32)
    # PyTorch default conv bias init: U(-1/sqrt(fan_in), 1/sqrt(fan_in)), fan_in = C_in * k
    b1 = jax.random.uniform(kb1, (C1,), dtype=jnp.float32,
                            minval=-1.0, maxval=1.0) / (C_IN * 3) ** 0.5
    b2 = jax.random.uniform(kb2, (C2,), dtype=jnp.float32,
                            minval=-1.0, maxval=1.0) / (C1 * 3) ** 0.5

    # one-time weight re-layout (model-load time), outside the per-call path
    w1cat, w2k, b2r = prepare_params(w1, b1, w2, b2)

    out = client_ptb_forward(x, w1cat, w2k, b2r)
    out = jax.block_until_ready(out)

    assert out.shape == (N, C2, L_POOL2), out.shape
    ref = ref_forward(x, w1, b1, w2, b2)
    np.testing.assert_allclose(np.asarray(out), np.asarray(ref),
                               rtol=1e-4, atol=1e-4)
    print("KERNEL_OK")
</pallas_src>

<mosaic_0001>
module attributes {stable_mosaic.version = 11 : i64} {
  func.func @client_ptb_kernel(%arg0: i32, %arg1: memref<64x37xf32, #tpu.memory_space<vmem>>, %arg2: memref<37x192xf32, #tpu.memory_space<vmem>>, %arg3: memref<3x192x192xf32, #tpu.memory_space<vmem>>, %arg4: memref<1x192xf32, #tpu.memory_space<vmem>>, %arg5: memref<6x192xf32, #tpu.memory_space<vmem>>) attributes {dimension_semantics = [#tpu.dimension_semantics<arbitrary>], iteration_bounds = array<i64: 1>, scalar_prefetch = 0 : i64, scratch_operands = 0 : i64, tpu.core_type = #tpu.core_type<tc>, window_params = [{pipeline_mode = #tpu.pipeline_mode<synchronous>, transform_indices = @transform_0, window_bounds = array<i64: 64, 37>}, {pipeline_mode = #tpu.pipeline_mode<synchronous>, transform_indices = @transform_1, window_bounds = array<i64: 37, 192>}, {pipeline_mode = #tpu.pipeline_mode<synchronous>, transform_indices = @transform_2, window_bounds = array<i64: 3, 192, 192>}, {pipeline_mode = #tpu.pipeline_mode<synchronous>, transform_indices = @transform_3, window_bounds = array<i64: 1, 192>}, {pipeline_mode = #tpu.pipeline_mode<synchronous>, transform_indices = @transform_4, window_bounds = array<i64: 6, 192>}]} {
    %c0 = arith.constant 0 : index
    %c0_0 = arith.constant 0 : index
    %0 = vector.load %arg1[%c0, %c0_0] : memref<64x37xf32, #tpu.memory_space<vmem>>, vector<64x37xf32>
    %c0_1 = arith.constant 0 : index
    %c0_2 = arith.constant 0 : index
    %1 = vector.load %arg2[%c0_1, %c0_2] : memref<37x192xf32, #tpu.memory_space<vmem>>, vector<37x192xf32>
    %cst = arith.constant dense<0.000000e+00> : vector<64x192xf32>
    %2 = tpu.matmul %0, %1, %cst {dimension_numbers = #tpu.dot_dimension_numbers<[1], [0], [0], [1], [0, 0, 1, 1], [], []>} : vector<64x37xf32>, vector<37x192xf32>, vector<64x192xf32> -> vector<64x192xf32>
    %cst_3 = arith.constant 0.000000e+00 : f32
    %3 = vector.broadcast %cst_3 : f32 to vector<64x192xf32>
    %4 = arith.maximumf %2, %3 : vector<64x192xf32>
    %5 = vector.extract_strided_slice %4 {offsets = [0, 0], sizes = [16, 192], strides = [1, 1]} : vector<64x192xf32> to vector<16x192xf32>
    %6 = vector.extract_strided_slice %4 {offsets = [16, 0], sizes = [16, 192], strides = [1, 1]} : vector<64x192xf32> to vector<16x192xf32>
    %7 = vector.extract_strided_slice %4 {offsets = [32, 0], sizes = [16, 192], strides = [1, 1]} : vector<64x192xf32> to vector<16x192xf32>
    %8 = vector.extract_strided_slice %4 {offsets = [48, 0], sizes = [16, 192], strides = [1, 1]} : vector<64x192xf32> to vector<16x192xf32>
    %9 = arith.maximumf %5, %6 : vector<16x192xf32>
    %10 = arith.maximumf %9, %7 : vector<16x192xf32>
    %11 = vector.extract_strided_slice %4 {offsets = [1, 0], sizes = [16, 192], strides = [1, 1]} : vector<64x192xf32> to vector<16x192xf32>
    %12 = arith.maximumf %7, %8 : vector<16x192xf32>
    %13 = arith.maximumf %12, %11 : vector<16x192xf32>
    %14 = tpu.iota {dimensions = array<i32: 0>} : vector<16x192xi32>
    %c8_i32 = arith.constant 8 : i32
    %c0_i32 = arith.constant 0 : i32
    %15 = arith.cmpi eq, %c8_i32, %c0_i32 : i32
    %c1_i32 = arith.constant 1 : i32
    %16 = arith.select %15, %c1_i32, %c8_i32 : i32
    %17 = vector.broadcast %16 : i32 to vector<16x192xi32>
    %18 = arith.remsi %14, %17 : vector<16x192xi32>
    %c0_i32_4 = arith.constant 0 : i32
    %19 = vector.broadcast %c0_i32_4 : i32 to vector<16x192xi32>
    %20 = arith.cmpi ne, %18, %19 : vector<16x192xi32>
    %c0_i32_5 = arith.constant 0 : i32
    %21 = vector.broadcast %c0_i32_5 : i32 to vector<16x192xi32>
    %22 = arith.cmpi slt, %18, %21 : vector<16x192xi32>
    %c0_i32_6 = arith.constant 0 : i32
    %23 = arith.cmpi slt, %16, %c0_i32_6 : i32
    %24 = vector.broadcast %23 : i1 to vector<16x192xi1>
    %25 = vector.broadcast %24 : vector<16x192xi1> to vector<16x192xi1>
    %26 = arith.xori %22, %25 : vector<16x192xi1>
    %27 = arith.andi %26, %20 : vector<16x192xi1>
    %28 = vector.broadcast %16 : i32 to vector<16x192xi32>
    %29 = arith.addi %18, %28 : vector<16x192xi32>
    %30 = arith.select %27, %29, %18 : vector<16x192xi1>, vector<16x192xi32>
    %c7_i32 = arith.constant 7 : i32
    %31 = vector.broadcast %c7_i32 : i32 to vector<16x192xi32>
    %32 = arith.cmpi eq, %30, %31 : vector<16x192xi32>
    %cst_7 = arith.constant 0.000000e+00 : f32
    %33 = vector.broadcast %cst_7 : f32 to vector<16x192xf32>
    %34 = arith.select %32, %33, %13 : vector<16x192xi1>, vector<16x192xf32>
    %cst_8 = arith.constant 0.000000e+00 : f32
    %35 = vector.broadcast %cst_8 : f32 to vector<1x192xf32>
    %36 = vector.extract_strided_slice %34 {offsets = [0, 0], sizes = [15, 192], strides = [1, 1]} : vector<16x192xf32> to vector<15x192xf32>
    %37 = tpu.concatenate %35, %36 in 0 : vector<1x192xf32>, vector<15x192xf32> -> vector<16x192xf32>
    %c0_9 = arith.constant 0 : index
    %c0_10 = arith.constant 0 : index
    %c0_11 = arith.constant 0 : index
    %38 = vector.load %arg3[%c0_9, %c0_10, %c0_11] : memref<3x192x192xf32, #tpu.memory_space<vmem>>, vector<1x192x192xf32>
    %39 = vector.shape_cast %38 : vector<1x192x192xf32> to vector<192x192xf32>
    %cst_12 = arith.constant dense<0.000000e+00> : vector<16x192xf32>
    %40 = tpu.matmul %37, %39, %cst_12 {dimension_numbers = #tpu.dot_dimension_numbers<[1], [0], [0], [1], [0, 0, 1, 1], [], []>} : vector<16x192xf32>, vector<192x192xf32>, vector<16x192xf32> -> vector<16x192xf32>
    %c1 = arith.constant 1 : index
    %c0_13 = arith.constant 0 : index
    %c0_14 = arith.constant 0 : index
    %41 = vector.load %arg3[%c1, %c0_13, %c0_14] : memref<3x192x192xf32, #tpu.memory_space<vmem>>, vector<1x192x192xf32>
    %42 = vector.shape_cast %41 : vector<1x192x192xf32> to vector<192x192xf32>
    %cst_15 = arith.constant dense<0.000000e+00> : vector<16x192xf32>
    %43 = tpu.matmul %10, %42, %cst_15 {dimension_numbers = #tpu.dot_dimension_numbers<[1], [0], [0], [1], [0, 0, 1, 1], [], []>} : vector<16x192xf32>, vector<192x192xf32>, vector<16x192xf32> -> vector<16x192xf32>
    %44 = arith.addf %40, %43 : vector<16x192xf32>
    %c2 = arith.constant 2 : index
    %c0_16 = arith.constant 0 : index
    %c0_17 = arith.constant 0 : index
    %45 = vector.load %arg3[%c2, %c0_16, %c0_17] : memref<3x192x192xf32, #tpu.memory_space<vmem>>, vector<1x192x192xf32>
    %46 = vector.shape_cast %45 : vector<1x192x192xf32> to vector<192x192xf32>
    %cst_18 = arith.constant dense<0.000000e+00> : vector<16x192xf32>
    %47 = tpu.matmul %34, %46, %cst_18 {dimension_numbers = #tpu.dot_dimension_numbers<[1], [0], [0], [1], [0, 0, 1, 1], [], []>} : vector<16x192xf32>, vector<192x192xf32>, vector<16x192xf32> -> vector<16x192xf32>
    %48 = arith.addf %44, %47 : vector<16x192xf32>
    %c0_19 = arith.constant 0 : index
    %c0_20 = arith.constant 0 : index
    %49 = vector.load %arg4[%c0_19, %c0_20] : memref<1x192xf32, #tpu.memory_space<vmem>>, vector<1x192xf32>
    %50 = vector.broadcast %49 : vector<1x192xf32> to vector<16x192xf32>
    %51 = arith.addf %48, %50 : vector<16x192xf32>
    %cst_21 = arith.constant 0.000000e+00 : f32
    %52 = vector.broadcast %cst_21 : f32 to vector<16x192xf32>
    %53 = arith.maximumf %51, %52 : vector<16x192xf32>
    %54 = vector.extract_strided_slice %53 {offsets = [0, 0], sizes = [1, 192], strides = [1, 1]} : vector<16x192xf32> to vector<1x192xf32>
    %55 = vector.extract_strided_slice %53 {offsets = [1, 0], sizes = [1, 192], strides = [1, 1]} : vector<16x192xf32> to vector<1x192xf32>
    %56 = arith.maximumf %54, %55 : vector<1x192xf32>
    %57 = vector.extract_strided_slice %53 {offsets = [2, 0], sizes = [1, 192], strides = [1, 1]} : vector<16x192xf32> to vector<1x192xf32>
    %58 = arith.maximumf %56, %57 : vector<1x192xf32>
    %59 = vector.extract_strided_slice %53 {offsets = [2, 0], sizes = [1, 192], strides = [1, 1]} : vector<16x192xf32> to vector<1x192xf32>
    %60 = vector.extract_strided_slice %53 {offsets = [3, 0], sizes = [1, 192], strides = [1, 1]} : vector<16x192xf32> to vector<1x192xf32>
    %61 = arith.maximumf %59, %60 : vector<1x192xf32>
    %62 = vector.extract_strided_slice %53 {offsets = [4, 0], sizes = [1, 192], strides = [1, 1]} : vector<16x192xf32> to vector<1x192xf32>
    %63 = arith.maximumf %61, %62 : vector<1x192xf32>
    %64 = vector.extract_strided_slice %53 {offsets = [4, 0], sizes = [1, 192], strides = [1, 1]} : vector<16x192xf32> to vector<1x192xf32>
    %65 = vector.extract_strided_slice %53 {offsets = [5, 0], sizes = [1, 192], strides = [1, 1]} : vector<16x192xf32> to vector<1x192xf32>
    %66 = arith.maximumf %64, %65 : vector<1x192xf32>
    %67 = vector.extract_strided_slice %53 {offsets = [6, 0], sizes = [1, 192], strides = [1, 1]} : vector<16x192xf32> to vector<1x192xf32>
    %68 = arith.maximumf %66, %67 : vector<1x192xf32>
    %69 = vector.extract_strided_slice %53 {offsets = [8, 0], sizes = [1, 192], strides = [1, 1]} : vector<16x192xf32> to vector<1x192xf32>
    %70 = vector.extract_strided_slice %53 {offsets = [9, 0], sizes = [1, 192], strides = [1, 1]} : vector<16x192xf32> to vector<1x192xf32>
    %71 = arith.maximumf %69, %70 : vector<1x192xf32>
    %72 = vector.extract_strided_slice %53 {offsets = [10, 0], sizes = [1, 192], strides = [1, 1]} : vector<16x192xf32> to vector<1x192xf32>
    %73 = arith.maximumf %71, %72 : vector<1x192xf32>
    %74 = vector.extract_strided_slice %53 {offsets = [10, 0], sizes = [1, 192], strides = [1, 1]} : vector<16x192xf32> to vector<1x192xf32>
    %75 = vector.extract_strided_slice %53 {offsets = [11, 0], sizes = [1, 192], strides = [1, 1]} : vector<16x192xf32> to vector<1x192xf32>
    %76 = arith.maximumf %74, %75 : vector<1x192xf32>
    %77 = vector.extract_strided_slice %53 {offsets = [12, 0], sizes = [1, 192], strides = [1, 1]} : vector<16x192xf32> to vector<1x192xf32>
    %78 = arith.maximumf %76, %77 : vector<1x192xf32>
    %79 = vector.extract_strided_slice %53 {offsets = [12, 0], sizes = [1, 192], strides = [1, 1]} : vector<16x192xf32> to vector<1x192xf32>
    %80 = vector.extract_strided_slice %53 {offsets = [13, 0], sizes = [1, 192], strides = [1, 1]} : vector<16x192xf32> to vector<1x192xf32>
    %81 = arith.maximumf %79, %80 : vector<1x192xf32>
    %82 = vector.extract_strided_slice %53 {offsets = [14, 0], sizes = [1, 192], strides = [1, 1]} : vector<16x192xf32> to vector<1x192xf32>
    %83 = arith.maximumf %81, %82 : vector<1x192xf32>
    %84 = tpu.concatenate %58, %63, %68, %73, %78, %83 in 0 : vector<1x192xf32>, vector<1x192xf32>, vector<1x192xf32>, vector<1x192xf32>, vector<1x192xf32>, vector<1x192xf32> -> vector<6x192xf32>
    %c0_22 = arith.constant 0 : index
    %c0_23 = arith.constant 0 : index
    %85 = vector.load %arg5[%c0_22, %c0_23] : memref<6x192xf32, #tpu.memory_space<vmem>>, vector<6x192xf32>
    tpu.vector_store %arg5[%c0_22, %c0_23], %84 {strides = array<i32>} : memref<6x192xf32, #tpu.memory_space<vmem>>, vector<6x192xf32>,
    return
  }
  func.func @transform_0(%arg0: i32) -> (i32, i32) {
    %c0_i32 = arith.constant 0 : i32
    %c0_i32_0 = arith.constant 0 : i32
    %c0_i32_1 = arith.constant 0 : i32
    return %c0_i32, %c0_i32_0 : i32, i32
  }
  func.func @transform_1(%arg0: i32) -> (i32, i32) {
    %c0_i32 = arith.constant 0 : i32
    %c0_i32_0 = arith.constant 0 : i32
    %c0_i32_1 = arith.constant 0 : i32
    return %c0_i32, %c0_i32_0 : i32, i32
  }
  func.func @transform_2(%arg0: i32) -> (i32, i32, i32) {
    %c0_i32 = arith.constant 0 : i32
    %c0_i32_0 = arith.constant 0 : i32
    %c0_i32_1 = arith.constant 0 : i32
    %c0_i32_2 = arith.constant 0 : i32
    return %c0_i32, %c0_i32_0, %c0_i32_1 : i32, i32, i32
  }
  func.func @transform_3(%arg0: i32) -> (i32, i32) {
    %c0_i32 = arith.constant 0 : i32
    %c0_i32_0 = arith.constant 0 : i32
    %c0_i32_1 = arith.constant 0 : i32
    return %c0_i32, %c0_i32_0 : i32, i32
  }
  func.func @transform_4(%arg0: i32) -> (i32, i32) {
    %c0_i32 = arith.constant 0 : i32
    %c0_i32_0 = arith.constant 0 : i32
    %c0_i32_1 = arith.constant 0 : i32
    return %c0_i32, %c0_i32_0 : i32, i32
  }
}

</mosaic_0001>

<llo_original>
// kernel: client_ptb_forward.1
$region0: #{client_ptb_forward.1}
  #allocation0 [shape = 'u32[]', space=smem, size = 0x4, offset = 0x4, fixed_abs, tag = 'smem constant byte address 0x4 - core index']
  #allocation1 [shape = 'u32[144,128]{1,0:T(1,128)}', space=vmem, size = 0x12000, scoped, tag = 'internal scratch']
  %s0 = inlined_call_operand.vmem [shape: f32[64,37], index: 0, kind: input, shape index: {}]
  %s1 = inlined_call_operand.hbm [shape: f32[37,192], index: 1, kind: input, shape index: {}]
  %s2 = inlined_call_operand.vmem [shape: f32[3,192,192], index: 2, kind: input, shape index: {}]
  %s3 = inlined_call_operand.vmem [shape: f32[1,192], index: 3, kind: input, shape index: {}]
  %s4 = inlined_call_operand.vmem [shape: f32[6,192], index: 4, kind: output, shape index: {}]
  %s5 = sld [smem:[#allocation0]]
  $region30: #{client_ptb_forward.1} parent=0
    _
  %s7 = ssub.s32 1, %s5
  %s8 = scalar_select 0, %s7, %s5
  $region1: #{client_ptb_forward.1} parent=0
    #allocation2 [shape = 'u8[40960]{0}', space=vmem, size = 0xa000, scoped, tag = 'input window, operand 1, single buffered']
    #allocation3 [shape = 's32[1]{0}', space=sflag, size = 0x4, scoped, tag = 'scoped memory for client_ptb_forward.1']
    %9 = vsyncpa [#allocation3], 0
    // Predicated region
    $region2: #{client_ptb_forward.1} parent=1 // pred_check
      _
    $region3: #{client_ptb_forward.1} parent=1 // pred_check_branch
      %11 = sbr.rel (0) target = $region5
    $region4: #{client_ptb_forward.1} parent=1 // pred_region
      _
    $region5: #{client_ptb_forward.1} parent=1 // pred_fallthru
      _
    // Predicated region
    $region6: #{client_ptb_forward.1} parent=1 // pred_check
      _
    $region7: #{client_ptb_forward.1} parent=1 // pred_check_branch
      %13 = sbr.rel (0) target = $region9
    $region8: #{client_ptb_forward.1} parent=1 // pred_region
      %s15 = ssub.s32 1280, 1280
      %16 = vsyncadd [#allocation3], %s15
      %s17 = sshll.u32 [#allocation2], 4
      %s18 = int_to_ptr.vmem [resolvable:$true] %s17
      %23 = dma.hbm_to_vmem [thread:$0]  %s1, 1280, %s18, [#allocation3], 256, 256, 16
    $region9: #{client_ptb_forward.1} parent=1 // pred_fallthru
      _
    // Predicated region
    $region10: #{client_ptb_forward.1} parent=1 // pred_check
      _
    $region11: #{client_ptb_forward.1} parent=1 // pred_check_branch
      %25 = sbr.rel (0) target = $region13
    $region12: #{client_ptb_forward.1} parent=1 // pred_region
      _
    $region13: #{client_ptb_forward.1} parent=1 // pred_fallthru
      _
    // Predicated region
    $region14: #{client_ptb_forward.1} parent=1 // pred_check
      _
    $region15: #{client_ptb_forward.1} parent=1 // pred_check_branch
      %27 = sbr.rel (0) target = $region17
    $region16: #{client_ptb_forward.1} parent=1 // pred_region
      _
    $region17: #{client_ptb_forward.1} parent=1 // pred_fallthru
      _
    // Predicated region
    $region18: #{client_ptb_forward.1} parent=1 // pred_check
      _
    $region19: #{client_ptb_forward.1} parent=1 // pred_check_branch
      %29 = sbr.rel (0) target = $region21
    $region20: #{client_ptb_forward.1} parent=1 // pred_region
      %30 = dma.done [#allocation3], 1280
    $region21: #{client_ptb_forward.1} parent=1 // pred_fallthru
      _
    %v31 = vld [vmem:[%s0] sm:$0xff]
    %v32 = vld [vmem:[%s0 + $0x8] sm:$0xff]
    %v33 = vld [vmem:[%s0 + $0x10] sm:$0xff]
    %v34 = vld [vmem:[%s0 + $0x18] sm:$0xff]
    %v35 = vld [vmem:[%s0 + $0x20] sm:$0xff]
    %v36 = vld [vmem:[%s0 + $0x28] sm:$0xff]
    %v37 = vld [vmem:[%s0 + $0x30] sm:$0xff]
    %v38 = vld [vmem:[%s0 + $0x38] sm:$0xff]
    %v39 = vld [vmem:[#allocation2] sm:$0xff]
    %v40 = vld [vmem:[#allocation2 + $0x8] sm:$0xff]
    %v41 = vld [vmem:[#allocation2 + $0x10] sm:$0xff]
    %v42 = vld [vmem:[#allocation2 + $0x18] sm:$0xff]
    %v43 = vld [vmem:[#allocation2 + $0x20] sm:$0xff]
    %v44 = vld [vmem:[#allocation2 + $0x28] sm:$0xff]
    %v45 = vld [vmem:[#allocation2 + $0x30] sm:$0xff]
    %v46 = vld [vmem:[#allocation2 + $0x38] sm:$0xff]
    %v47 = vld [vmem:[#allocation2 + $0x40] sm:$0x1f]
    %v48 = vld [vmem:[#allocation2 + $0x48] sm:$0x1f]
    %vm49 = vcmask 302080
    %v51 = vsel %vm49, %v31, 0
    %v54 = vsel %vm49, %v32, 0
    %v57 = vsel %vm49, %v33, 0
    %v60 = vsel %vm49, %v34, 0
    %v63 = vsel %vm49, %v35, 0
    %v66 = vsel %vm49, %v36, 0
    %v69 = vsel %vm49, %v37, 0
    %v72 = vsel %vm49, %v38, 0
    %vm74 = vcmask 1044480
    %v76 = vsel %vm74, %v47, 0
    %v79 = vsel %vm74, %v48, 0
    %81 = vmatprep.subr.mxu0 %v40
    %82 = vmatpush1.msra.mxu0 %v39
    %83 = vmatprep.subr.mxu0 %v42
    %84 = vmatpush1.msra.mxu0 %v41
    %85 = vmatprep.subr.mxu0 %v44
    %86 = vmatpush1.msra.mxu0 %v43
    %87 = vmatprep.subr.mxu0 %v46
    %88 = vmatpush1.msra.mxu0 %v45
    %89 = vmatprep.subr.mxu0 %v79
    %90 = vmatpush1.msra.mxu0 %v76
    %91 = vmatprep.subr.mxu0 0.0
    %92 = vmatpush1.msra.mxu0 0.0
    %93 = vmatprep.subr.mxu0 0.0
    %94 = vmatpush1.msra.mxu0 0.0
    %95 = vmatprep.subr.mxu0 0.0
    %96 = vmatpush1.msra.mxu0 0.0
    %97 = vmatprep.subr.mxu0 0.0
    %98 = vmatpush1.msra.mxu0 0.0
    %99 = vmatprep.subr.mxu0 0.0
    %100 = vmatpush1.msra.mxu0 0.0
    %101 = vmatprep.subr.mxu0 0.0
    %102 = vmatpush1.msra.mxu0 0.0
    %103 = vmatprep.subr.mxu0 0.0
    %104 = vmatpush1.msra.mxu0 0.0
    %105 = vmatprep.subr.mxu0 0.0
    %106 = vmatpush1.msra.mxu0 0.0
    %107 = vmatprep.subr.mxu0 0.0
    %108 = vmatpush1.msra.mxu0 0.0
    %109 = vmatprep.subr.mxu0 0.0
    %110 = vmatpush1.msra.mxu0 0.0
    %111 = vmatprep.subr.mxu0 0.0
    %112 = vmatpush1.msra.mxu0 0.0
    %113 = vmatprep.subr.mxu0 0.0
    %114 = vmatpush1.msra.mxu0 0.0
    %115 = vmatprep.subr.mxu0 0.0
    %116 = vmatpush1.msra.mxu0 0.0
    %117 = vmatprep.subr.mxu0 0.0
    %118 = vmatpush1.msra.mxu0 0.0
    %119 = vmatprep.subr.mxu0 0.0
    %120 = vmatpush1.msra.mxu0 0.0
    %121 = vmatprep.subr.mxu0 0.0
    %122 = vmatpush1.msra.mxu0 0.0
    %123 = vmatprep.subr.mxu0 0.0
    %124 = vmatpush1.msra.mxu0 0.0
    %125 = vmatprep.subr.mxu0 0.0
    %126 = vmatpush1.msra.mxu0 0.0
    %127 = vmatprep.subr.mxu0 0.0
    %128 = vmatpush1.msra.mxu0 0.0
    %129 = vmatprep.subr.mxu0 0.0
    %130 = vmatpush1.msra.mxu0 0.0
    %131 = vmatprep.subr.mxu0 0.0
    %132 = vmatpush1.msra.mxu0 0.0
    %133 = vmatprep.subr.mxu0 0.0
    %134 = vmatpush1.msra.mxu0 0.0
    %135 = vmatprep.subr.mxu0 0.0
    %136 = vmatpush1.msra.mxu0 0.0
    %137 = vmatprep.subr.mxu0 0.0
    %138 = vmatpush1.msra.mxu0 0.0
    %139 = vmatprep.subr.mxu0 0.0
    %140 = vmatpush1.msra.mxu0 0.0
    %141 = vmatprep.subr.mxu0 0.0
    %142 = vmatpush1.msra.mxu0 0.0
    %143 = vmatprep.subr.mxu0 0.0
    %144 = vmatpush1.msra.mxu0 0.0
    %145 = vmatprep.mubr.f32.mxu0 0.0
    %146 = vmatmul.mubr.f32.gmra.mrb[0].mxu0 %v51
    %v147 = vpop.f32.mrb[0].mxu0
    %v148 = vadd.f32 0.0, %v147
    %v149 = vpop.f32.mrb[0].mxu0
    %v150 = vadd.f32 0.0, %v149
    %151 = vmatprep.mubr.f32.mxu0 0.0
    %152 = vmatmul.mubr.f32.gmra.mrb[0].mxu0 %v54
    %v153 = vpop.f32.mrb[0].mxu0
    %v154 = vadd.f32 0.0, %v153
    %v155 = vpop.f32.mrb[0].mxu0
    %v156 = vadd.f32 0.0, %v155
    %157 = vmatprep.mubr.f32.mxu0 0.0
    %158 = vmatmul.mubr.f32.gmra.mrb[0].mxu0 %v57
    %v159 = vpop.f32.mrb[0].mxu0
    %v160 = vadd.f32 0.0, %v159
    %v161 = vpop.f32.mrb[0].mxu0
    %v162 = vadd.f32 0.0, %v161
    %163 = vmatprep.mubr.f32.mxu0 0.0
    %164 = vmatmul.mubr.f32.gmra.mrb[0].mxu0 %v60
    %v165 = vpop.f32.mrb[0].mxu0
    %v166 = vadd.f32 0.0, %v165
    %v167 = vpop.f32.mrb[0].mxu0
    %v168 = vadd.f32 0.0, %v167
    %169 = vmatprep.mubr.f32.mxu0 0.0
    %170 = vmatmul.mubr.f32.gmra.mrb[0].mxu0 %v63
    %v171 = vpop.f32.mrb[0].mxu0
    %v172 = vadd.f32 0.0, %v171
    %v173 = vpop.f32.mrb[0].mxu0
    %v174 = vadd.f32 0.0, %v173
    %175 = vmatprep.mubr.f32.mxu0 0.0
    %176 = vmatmul.mubr.f32.gmra.mrb[0].mxu0 %v66
    %v177 = vpop.f32.mrb[0].mxu0
    %v178 = vadd.f32 0.0, %v177
    %v179 = vpop.f32.mrb[0].mxu0
    %v180 = vadd.f32 0.0, %v179
    %181 = vmatprep.mubr.f32.mxu0 0.0
    %182 = vmatmul.mubr.f32.gmra.mrb[0].mxu0 %v69
    %v183 = vpop.f32.mrb[0].mxu0
    %v184 = vadd.f32 0.0, %v183
    %v185 = vpop.f32.mrb[0].mxu0
    %v186 = vadd.f32 0.0, %v185
    %187 = vmatprep.mubr.f32.mxu0 0.0
    %188 = vmatmul.mubr.f32.gmra.mrb[0].mxu0 %v72
    %v189 = vpop.f32.mrb[0].mxu0
    %v190 = vadd.f32 0.0, %v189
    %v191 = vpop.f32.mrb[0].mxu0
    %v192 = vadd.f32 0.0, %v191
    %193 = vdwg.mxu0
    %v194 = vmax.f32 %v148, 0.0
    %v195 = vmax.f32 %v150, 0.0
    %v196 = vmax.f32 %v154, 0.0
    %v197 = vmax.f32 %v156, 0.0
    %v198 = vmax.f32 %v160, 0.0
    %v199 = vmax.f32 %v162, 0.0
    %v200 = vmax.f32 %v166, 0.0
    %v201 = vmax.f32 %v168, 0.0
    %v202 = vmax.f32 %v172, 0.0
    %v203 = vmax.f32 %v174, 0.0
    %v204 = vmax.f32 %v178, 0.0
    %v205 = vmax.f32 %v180, 0.0
    %v206 = vmax.f32 %v184, 0.0
    %v207 = vmax.f32 %v186, 0.0
    %v208 = vmax.f32 %v190, 0.0
    %v209 = vmax.f32 %v192, 0.0
    %v210 = vmax.f32 %v194, %v198
    %v211 = vmax.f32 %v195, %v199
    %v212 = vmax.f32 %v196, %v200
    %v213 = vmax.f32 %v197, %v201
    %v214 = vmax.f32 %v210, %v202
    %v215 = vmax.f32 %v211, %v203
    %v216 = vmax.f32 %v212, %v204
    %v217 = vmax.f32 %v213, %v205
    %v218 = vmax.f32 %v202, %v206
    %v219 = vmax.f32 %v203, %v207
    %v220 = vmax.f32 %v204, %v208
    %v221 = vmax.f32 %v205, %v209
    %vm228 = vcmask 1046528
    %v229 = vrot.slane %v194, 1
    %v230 = vrot.slane %v196, 1
    %v231 = vsel %vm228, %v229, %v230
    %v232 = vrot.slane %v195, 1
    %v233 = vrot.slane %v197, 1
    %v234 = vsel %vm228, %v232, %v233
    %v235 = vrot.slane %v198, 1
    %v236 = vsel %vm228, %v230, %v235
    %v237 = vrot.slane %v199, 1
    %v238 = vsel %vm228, %v233, %v237
    %v243 = vmax.f32 %v218, %v231
    %v244 = vmax.f32 %v219, %v234
    %v245 = vmax.f32 %v220, %v236
    %v246 = vmax.f32 %v221, %v238
    %v247 = vlaneseq
    %v248 = vshrl.u32 %v247, 7
    %v249 = vadd.s32 %v248, 8
    %vm250 = vcmp.lt.s32.totalorder %v248, 0
    %v251 = vsub.s32 0, %v248
    %v252 = vsel %vm250, %v251, %v248
    %v253 = vshrl.u32 %v252, 3
    %v254 = vand.u32 %v252, 7
    %v255 = vsub.s32 0, %v254
    %v256 = vsel %vm250, %v255, %v254
    %vm257 = vcmp.lt.s32.totalorder %v249, 0
    %v258 = vsub.s32 0, %v249
    %v259 = vsel %vm257, %v258, %v249
    %v260 = vshrl.u32 %v259, 3
    %v261 = vand.u32 %v259, 7
    %v262 = vsub.s32 0, %v261
    %v263 = vsel %vm257, %v262, %v261
    %vm264 = vcmp.ne.s32.totalorder %v256, 0
    %vm265 = vcmp.ne.s32.totalorder %v263, 0
    %vm266 = vcmp.lt.s32.totalorder %v256, 0
    %vm267 = vcmp.lt.s32.totalorder %v263, 0
    %vm268 = vmand %vm266, %vm264
    %vm269 = vmand %vm267, %vm265
    %v270 = vadd.s32 %v256, 8
    %v271 = vadd.s32 %v263, 8
    %v272 = vsel %vm268, %v270, %v256
    %v273 = vsel %vm269, %v271, %v263
    %vm274 = vcmp.eq.s32.totalorder %v272, 7
    %vm275 = vcmp.eq.s32.totalorder %v273, 7
    %v276 = vsel %vm274, 0.0, %v243
    %v277 = vsel %vm274, 0.0, %v244
    %v278 = vsel %vm275, 0.0, %v245
    %v279 = vsel %vm275, 0.0, %v246
    %vm284 = vcmask 1040384
    %v285 = vrot.slane %v276, 7
    %v286 = vrot.slane %v277, 7
    %v287 = vrot.slane %v278, 7
    %v288 = vsel %vm284, %v285, %v287
    %v289 = vrot.slane %v279, 7
    %v290 = vsel %vm284, %v286, %v289
    %v294 = vsel %vm284, 0.0, %v285
    %v295 = vsel %vm284, 0.0, %v286
    %v296 = vld [vmem:[%s2] sm:$0xff]
    %v297 = vld [vmem:[%s2 + $0x8] sm:$0xff]
    %v298 = vld [vmem:[%s2 + $0x10] sm:$0xff]
    %v299 = vld [vmem:[%s2 + $0x18] sm:$0xff]
    %v300 = vld [vmem:[%s2 + $0x20] sm:$0xff]
    %v301 = vld [vmem:[%s2 + $0x28] sm:$0xff]
    %v302 = vld [vmem:[%s2 + $0x30] sm:$0xff]
    %v303 = vld [vmem:[%s2 + $0x38] sm:$0xff]
    %v304 = vld [vmem:[%s2 + $0x40] sm:$0xff]
    %v305 = vld [vmem:[%s2 + $0x48] sm:$0xff]
    %v306 = vld [vmem:[%s2 + $0x50] sm:$0xff]
    %v307 = vld [vmem:[%s2 + $0x58] sm:$0xff]
    %v308 = vld [vmem:[%s2 + $0x60] sm:$0xff]
    %v309 = vld [vmem:[%s2 + $0x68] sm:$0xff]
    %v310 = vld [vmem:[%s2 + $0x70] sm:$0xff]
    %v311 = vld [vmem:[%s2 + $0x78] sm:$0xff]
    %v312 = vld [vmem:[%s2 + $0x80] sm:$0xff]
    %v313 = vld [vmem:[%s2 + $0x88] sm:$0xff]
    %v314 = vld [vmem:[%s2 + $0x90] sm:$0xff]
    %v315 = vld [vmem:[%s2 + $0x98] sm:$0xff]
    %v316 = vld [vmem:[%s2 + $0xa0] sm:$0xff]
    %v317 = vld [vmem:[%s2 + $0xa8] sm:$0xff]
    %v318 = vld [vmem:[%s2 + $0xb0] sm:$0xff]
    %v319 = vld [vmem:[%s2 + $0xb8] sm:$0xff]
    %v320 = vld [vmem:[%s2 + $0xc0] sm:$0xff]
    %v321 = vld [vmem:[%s2 + $0xc8] sm:$0xff]
    %v322 = vld [vmem:[%s2 + $0xd0] sm:$0xff]
    %v323 = vld [vmem:[%s2 + $0xd8] sm:$0xff]
    %v324 = vld [vmem:[%s2 + $0xe0] sm:$0xff]
    %v325 = vld [vmem:[%s2 + $0xe8] sm:$0xff]
    %v326 = vld [vmem:[%s2 + $0xf0] sm:$0xff]
    %v327 = vld [vmem:[%s2 + $0xf8] sm:$0xff]
    %v328 = vld [vmem:[%s2 + $0x100] sm:$0xff]
    %v329 = vld [vmem:[%s2 + $0x108] sm:$0xff]
    %v330 = vld [vmem:[%s2 + $0x110] sm:$0xff]
    %v331 = vld [vmem:[%s2 + $0x118] sm:$0xff]
    %v332 = vld [vmem:[%s2 + $0x120] sm:$0xff]
    %v333 = vld [vmem:[%s2 + $0x128] sm:$0xff]
    %v334 = vld [vmem:[%s2 + $0x130] sm:$0xff]
    %v335 = vld [vmem:[%s2 + $0x138] sm:$0xff]
    %v336 = vld [vmem:[%s2 + $0x140] sm:$0xff]
    %v337 = vld [vmem:[%s2 + $0x148] sm:$0xff]
    %v338 = vld [vmem:[%s2 + $0x150] sm:$0xff]
    %v339 = vld [vmem:[%s2 + $0x158] sm:$0xff]
    %v340 = vld [vmem:[%s2 + $0x160] sm:$0xff]
    %v341 = vld [vmem:[%s2 + $0x168] sm:$0xff]
    %v342 = vld [vmem:[%s2 + $0x170] sm:$0xff]
    %v343 = vld [vmem:[%s2 + $0x178] sm:$0xff]
    %s344 = scalar_lea.vmem %s2, 384
    %v345 = vld [vmem:[%s344] sm:$0xff]
    %v346 = vld [vmem:[%s344 + $0x8] sm:$0xff]
    %v347 = vld [vmem:[%s344 + $0x10] sm:$0xff]
    %v348 = vld [vmem:[%s344 + $0x18] sm:$0xff]
    %v349 = vld [vmem:[%s344 + $0x20] sm:$0xff]
    %v350 = vld [vmem:[%s344 + $0x28] sm:$0xff]
    %v351 = vld [vmem:[%s344 + $0x30] sm:$0xff]
    %v352 = vld [vmem:[%s344 + $0x38] sm:$0xff]
    %v353 = vld [vmem:[%s344 + $0x40] sm:$0xff]
    %v354 = vld [vmem:[%s344 + $0x48] sm:$0xff]
    %v355 = vld [vmem:[%s344 + $0x50] sm:$0xff]
    %v356 = vld [vmem:[%s344 + $0x58] sm:$0xff]
    %v357 = vld [vmem:[%s344 + $0x60] sm:$0xff]
    %v358 = vld [vmem:[%s344 + $0x68] sm:$0xff]
    %v359 = vld [vmem:[%s344 + $0x70] sm:$0xff]
    %v360 = vld [vmem:[%s344 + $0x78] sm:$0xff]
    %v361 = vld [vmem:[%s344 + $0x80] sm:$0xff]
    %v362 = vld [vmem:[%s344 + $0x88] sm:$0xff]
    %v363 = vld [vmem:[%s344 + $0x90] sm:$0xff]
    %v364 = vld [vmem:[%s344 + $0x98] sm:$0xff]
    %v365 = vld [vmem:[%s344 + $0xa0] sm:$0xff]
    %v366 = vld [vmem:[%s344 + $0xa8] sm:$0xff]
    %v367 = vld [vmem:[%s344 + $0xb0] sm:$0xff]
    %v368 = vld [vmem:[%s344 + $0xb8] sm:$0xff]
    %v369 = vld [vmem:[%s344 + $0xc0] sm:$0xff]
    %v370 = vld [vmem:[%s344 + $0xc8] sm:$0xff]
    %v371 = vld [vmem:[%s344 + $0xd0] sm:$0xff]
    %v372 = vld [vmem:[%s344 + $0xd8] sm:$0xff]
    %v373 = vld [vmem:[%s344 + $0xe0] sm:$0xff]
    %v374 = vld [vmem:[%s344 + $0xe8] sm:$0xff]
    %v375 = vld [vmem:[%s344 + $0xf0] sm:$0xff]
    %v376 = vld [vmem:[%s344 + $0xf8] sm:$0xff]
    %v377 = vld [vmem:[%s344 + $0x100] sm:$0xff]
    %v378 = vld [vmem:[%s344 + $0x108] sm:$0xff]
    %v379 = vld [vmem:[%s344 + $0x110] sm:$0xff]
    %v380 = vld [vmem:[%s344 + $0x118] sm:$0xff]
    %v381 = vld [vmem:[%s344 + $0x120] sm:$0xff]
    %v382 = vld [vmem:[%s344 + $0x128] sm:$0xff]
    %v383 = vld [vmem:[%s344 + $0x130] sm:$0xff]
    %v384 = vld [vmem:[%s344 + $0x138] sm:$0xff]
    %v385 = vld [vmem:[%s344 + $0x140] sm:$0xff]
    %v386 = vld [vmem:[%s344 + $0x148] sm:$0xff]
    %v387 = vld [vmem:[%s344 + $0x150] sm:$0xff]
    %v388 = vld [vmem:[%s344 + $0x158] sm:$0xff]
    %v389 = vld [vmem:[%s344 + $0x160] sm:$0xff]
    %v390 = vld [vmem:[%s344 + $0x168] sm:$0xff]
    %v391 = vld [vmem:[%s344 + $0x170] sm:$0xff]
    %v392 = vld [vmem:[%s344 + $0x178] sm:$0xff]
    %vm393 = vcmask 523264
    %v395 = vsel %vm393, %v215, 0
    %v398 = vsel %vm393, %v217, 0
    %400 = vmatprep.subr.mxu0 %v346
    %401 = vmatpush1.msra.mxu0 %v345
    %402 = vmatprep.subr.mxu0 %v348
    %403 = vmatpush1.msra.mxu0 %v347
    %404 = vmatprep.subr.mxu0 %v350
    %405 = vmatpush1.msra.mxu0 %v349
    %406 = vmatprep.subr.mxu0 %v352
    %407 = vmatpush1.msra.mxu0 %v351
    %408 = vmatprep.subr.mxu0 %v354
    %409 = vmatpush1.msra.mxu0 %v353
    %410 = vmatprep.subr.mxu0 %v356
    %411 = vmatpush1.msra.mxu0 %v355
    %412 = vmatprep.subr.mxu0 %v358
    %413 = vmatpush1.msra.mxu0 %v357
    %414 = vmatprep.subr.mxu0 %v360
    %415 = vmatpush1.msra.mxu0 %v359
    %416 = vmatprep.subr.mxu0 %v362
    %417 = vmatpush1.msra.mxu0 %v361
    %418 = vmatprep.subr.mxu0 %v364
    %419 = vmatpush1.msra.mxu0 %v363
    %420 = vmatprep.subr.mxu0 %v366
    %421 = vmatpush1.msra.mxu0 %v365
    %422 = vmatprep.subr.mxu0 %v368
    %423 = vmatpush1.msra.mxu0 %v367
    %424 = vmatprep.subr.mxu0 %v370
    %425 = vmatpush1.msra.mxu0 %v369
    %426 = vmatprep.subr.mxu0 %v372
    %427 = vmatpush1.msra.mxu0 %v371
    %428 = vmatprep.subr.mxu0 %v374
    %429 = vmatpush1.msra.mxu0 %v373
    %430 = vmatprep.subr.mxu0 %v376
    %431 = vmatpush1.msra.mxu0 %v375
    %432 = vmatprep.subr.mxu0 %v378
    %433 = vmatpush1.msra.mxu0 %v377
    %434 = vmatprep.subr.mxu0 %v380
    %435 = vmatpush1.msra.mxu0 %v379
    %436 = vmatprep.subr.mxu0 %v382
    %437 = vmatpush1.msra.mxu0 %v381
    %438 = vmatprep.subr.mxu0 %v384
    %439 = vmatpush1.msra.mxu0 %v383
    %440 = vmatprep.subr.mxu0 %v386
    %441 = vmatpush1.msra.mxu0 %v385
    %442 = vmatprep.subr.mxu0 %v388
    %443 = vmatpush1.msra.mxu0 %v387
    %444 = vmatprep.subr.mxu0 %v390
    %445 = vmatpush1.msra.mxu0 %v389
    %446 = vmatprep.subr.mxu0 %v392
    %447 = vmatpush1.msra.mxu0 %v391
    %448 = vmatprep.subr.mxu0 0.0
    %449 = vmatpush1.msra.mxu0 0.0
    %450 = vmatprep.subr.mxu0 0.0
    %451 = vmatpush1.msra.mxu0 0.0
    %452 = vmatprep.subr.mxu0 0.0
    %453 = vmatpush1.msra.mxu0 0.0
    %454 = vmatprep.subr.mxu0 0.0
    %455 = vmatpush1.msra.mxu0 0.0
    %456 = vmatprep.subr.mxu0 0.0
    %457 = vmatpush1.msra.mxu0 0.0
    %458 = vmatprep.subr.mxu0 0.0
    %459 = vmatpush1.msra.mxu0 0.0
    %460 = vmatprep.subr.mxu0 0.0
    %461 = vmatpush1.msra.mxu0 0.0
    %462 = vmatprep.subr.mxu0 0.0
    %463 = vmatpush1.msra.mxu0 0.0
    %464 = vmatprep.mubr.f32.mxu0 %v395
    %465 = vmatmul.mubr.f32.gmra.mrb[0].mxu0 %v214
    %v466 = vpop.f32.mrb[0].mxu0
    %v467 = vadd.f32 0.0, %v466
    %v468 = vpop.f32.mrb[0].mxu0
    %v469 = vadd.f32 0.0, %v468
    %470 = vmatprep.mubr.f32.mxu0 %v398
    %471 = vmatmul.mubr.f32.gmra.mrb[0].mxu0 %v216
    %v472 = vpop.f32.mrb[0].mxu0
    %v473 = vadd.f32 0.0, %v472
    %v474 = vpop.f32.mrb[0].mxu0
    %v475 = vadd.f32 0.0, %v474
    %476 = vdwg.mxu0
    %v478 = vsel %vm393, %v295, 0
    %v480 = vsel %vm393, %v290, 0
    %482 = vmatprep.subr.mxu0 %v297
    %483 = vmatpush1.msra.mxu0 %v296
    %484 = vmatprep.subr.mxu0 %v299
    %485 = vmatpush1.msra.mxu0 %v298
    %486 = vmatprep.subr.mxu0 %v301
    %487 = vmatpush1.msra.mxu0 %v300
    %488 = vmatprep.subr.mxu0 %v303
    %489 = vmatpush1.msra.mxu0 %v302
    %490 = vmatprep.subr.mxu0 %v305
    %491 = vmatpush1.msra.mxu0 %v304
    %492 = vmatprep.subr.mxu0 %v307
    %493 = vmatpush1.msra.mxu0 %v306
    %494 = vmatprep.subr.mxu0 %v309
    %495 = vmatpush1.msra.mxu0 %v308
    %496 = vmatprep.subr.mxu0 %v311
    %497 = vmatpush1.msra.mxu0 %v310
    %498 = vmatprep.subr.mxu0 %v313
    %499 = vmatpush1.msra.mxu0 %v312
    %500 = vmatprep.subr.mxu0 %v315
    %501 = vmatpush1.msra.mxu0 %v314
    %502 = vmatprep.subr.mxu0 %v317
    %503 = vmatpush1.msra.mxu0 %v316
    %504 = vmatprep.subr.mxu0 %v319
    %505 = vmatpush1.msra.mxu0 %v318
    %506 = vmatprep.subr.mxu0 %v321
    %507 = vmatpush1.msra.mxu0 %v320
    %508 = vmatprep.subr.mxu0 %v323
    %509 = vmatpush1.msra.mxu0 %v322
    %510 = vmatprep.subr.mxu0 %v325
    %511 = vmatpush1.msra.mxu0 %v324
    %512 = vmatprep.subr.mxu0 %v327
    %513 = vmatpush1.msra.mxu0 %v326
    %514 = vmatprep.subr.mxu0 %v329
    %515 = vmatpush1.msra.mxu0 %v328
    %516 = vmatprep.subr.mxu0 %v331
    %517 = vmatpush1.msra.mxu0 %v330
    %518 = vmatprep.subr.mxu0 %v333
    %519 = vmatpush1.msra.mxu0 %v332
    %520 = vmatprep.subr.mxu0 %v335
    %521 = vmatpush1.msra.mxu0 %v334
    %522 = vmatprep.subr.mxu0 %v337
    %523 = vmatpush1.msra.mxu0 %v336
    %524 = vmatprep.subr.mxu0 %v339
    %525 = vmatpush1.msra.mxu0 %v338
    %526 = vmatprep.subr.mxu0 %v341
    %527 = vmatpush1.msra.mxu0 %v340
    %528 = vmatprep.subr.mxu0 %v343
    %529 = vmatpush1.msra.mxu0 %v342
    %530 = vmatprep.subr.mxu0 0.0
    %531 = vmatpush1.msra.mxu0 0.0
    %532 = vmatprep.subr.mxu0 0.0
    %533 = vmatpush1.msra.mxu0 0.0
    %534 = vmatprep.subr.mxu0 0.0
    %535 = vmatpush1.msra.mxu0 0.0
    %536 = vmatprep.subr.mxu0 0.0
    %537 = vmatpush1.msra.mxu0 0.0
    %538 = vmatprep.subr.mxu0 0.0
    %539 = vmatpush1.msra.mxu0 0.0
    %540 = vmatprep.subr.mxu0 0.0
    %541 = vmatpush1.msra.mxu0 0.0
    %542 = vmatprep.subr.mxu0 0.0
    %543 = vmatpush1.msra.mxu0 0.0
    %544 = vmatprep.subr.mxu0 0.0
    %545 = vmatpush1.msra.mxu0 0.0
    %546 = vmatprep.mubr.f32.mxu0 %v478
    %547 = vmatmul.mubr.f32.gmra.mrb[0].mxu0 %v294
    %v548 = vpop.f32.mrb[0].mxu0
    %v549 = vadd.f32 %v467, %v548
    %v550 = vpop.f32.mrb[0].mxu0
    %v551 = vadd.f32 %v469, %v550
    %552 = vmatprep.mubr.f32.mxu0 %v480
    %553 = vmatmul.mubr.f32.gmra.mrb[0].mxu0 %v288
    %v554 = vpop.f32.mrb[0].mxu0
    %v555 = vadd.f32 %v473, %v554
    %v556 = vpop.f32.mrb[0].mxu0
    %v557 = vadd.f32 %v475, %v556
    %558 = vdwg.mxu0
    %s559 = scalar_lea.vmem %s2, 768
    %v560 = vld [vmem:[%s559] sm:$0xff]
    %v561 = vld [vmem:[%s559 + $0x8] sm:$0xff]
    %v562 = vld [vmem:[%s559 + $0x10] sm:$0xff]
    %v563 = vld [vmem:[%s559 + $0x18] sm:$0xff]
    %v564 = vld [vmem:[%s559 + $0x20] sm:$0xff]
    %v565 = vld [vmem:[%s559 + $0x28] sm:$0xff]
    %v566 = vld [vmem:[%s559 + $0x30] sm:$0xff]
    %v567 = vld [vmem:[%s559 + $0x38] sm:$0xff]
    %v568 = vld [vmem:[%s559 + $0x40] sm:$0xff]
    %v569 = vld [vmem:[%s559 + $0x48] sm:$0xff]
    %v570 = vld [vmem:[%s559 + $0x50] sm:$0xff]
    %v571 = vld [vmem:[%s559 + $0x58] sm:$0xff]
    %v572 = vld [vmem:[%s559 + $0x60] sm:$0xff]
    %v573 = vld [vmem:[%s559 + $0x68] sm:$0xff]
    %v574 = vld [vmem:[%s559 + $0x70] sm:$0xff]
    %v575 = vld [vmem:[%s559 + $0x78] sm:$0xff]
    %v576 = vld [vmem:[%s559 + $0x80] sm:$0xff]
    %v577 = vld [vmem:[%s559 + $0x88] sm:$0xff]
    %v578 = vld [vmem:[%s559 + $0x90] sm:$0xff]
    %v579 = vld [vmem:[%s559 + $0x98] sm:$0xff]
    %v580 = vld [vmem:[%s559 + $0xa0] sm:$0xff]
    %v581 = vld [vmem:[%s559 + $0xa8] sm:$0xff]
    %v582 = vld [vmem:[%s559 + $0xb0] sm:$0xff]
    %v583 = vld [vmem:[%s559 + $0xb8] sm:$0xff]
    %v584 = vld [vmem:[%s559 + $0xc0] sm:$0xff]
    %v585 = vld [vmem:[%s559 + $0xc8] sm:$0xff]
    %v586 = vld [vmem:[%s559 + $0xd0] sm:$0xff]
    %v587 = vld [vmem:[%s559 + $0xd8] sm:$0xff]
    %v588 = vld [vmem:[%s559 + $0xe0] sm:$0xff]
    %v589 = vld [vmem:[%s559 + $0xe8] sm:$0xff]
    %v590 = vld [vmem:[%s559 + $0xf0] sm:$0xff]
    %v591 = vld [vmem:[%s559 + $0xf8] sm:$0xff]
    %v592 = vld [vmem:[%s559 + $0x100] sm:$0xff]
    %v593 = vld [vmem:[%s559 + $0x108] sm:$0xff]
    %v594 = vld [vmem:[%s559 + $0x110] sm:$0xff]
    %v595 = vld [vmem:[%s559 + $0x118] sm:$0xff]
    %v596 = vld [vmem:[%s559 + $0x120] sm:$0xff]
    %v597 = vld [vmem:[%s559 + $0x128] sm:$0xff]
    %v598 = vld [vmem:[%s559 + $0x130] sm:$0xff]
    %v599 = vld [vmem:[%s559 + $0x138] sm:$0xff]
    %v600 = vld [vmem:[%s559 + $0x140] sm:$0xff]
    %v601 = vld [vmem:[%s559 + $0x148] sm:$0xff]
    %v602 = vld [vmem:[%s559 + $0x150] sm:$0xff]
    %v603 = vld [vmem:[%s559 + $0x158] sm:$0xff]
    %v604 = vld [vmem:[%s559 + $0x160] sm:$0xff]
    %v605 = vld [vmem:[%s559 + $0x168] sm:$0xff]
    %v606 = vld [vmem:[%s559 + $0x170] sm:$0xff]
    %v607 = vld [vmem:[%s559 + $0x178] sm:$0xff]
    %v608 = vsel %vm393, %v277, 0
    %v610 = vsel %vm393, %v279, 0
    %612 = vmatprep.subr.mxu0 %v561
    %613 = vmatpush1.msra.mxu0 %v560
    %614 = vmatprep.subr.mxu0 %v563
    %615 = vmatpush1.msra.mxu0 %v562
    %616 = vmatprep.subr.mxu0 %v565
    %617 = vmatpush1.msra.mxu0 %v564
    %618 = vmatprep.subr.mxu0 %v567
    %619 = vmatpush1.msra.mxu0 %v566
    %620 = vmatprep.subr.mxu0 %v569
    %621 = vmatpush1.msra.mxu0 %v568
    %622 = vmatprep.subr.mxu0 %v571
    %623 = vmatpush1.msra.mxu0 %v570
    %624 = vmatprep.subr.mxu0 %v573
    %625 = vmatpush1.msra.mxu0 %v572
    %626 = vmatprep.subr.mxu0 %v575
    %627 = vmatpush1.msra.mxu0 %v574
    %628 = vmatprep.subr.mxu0 %v577
    %629 = vmatpush1.msra.mxu0 %v576
    %630 = vmatprep.subr.mxu0 %v579
    %631 = vmatpush1.msra.mxu0 %v578
    %632 = vmatprep.subr.mxu0 %v581
    %633 = vmatpush1.msra.mxu0 %v580
    %634 = vmatprep.subr.mxu0 %v583
    %635 = vmatpush1.msra.mxu0 %v582
    %636 = vmatprep.subr.mxu0 %v585
    %637 = vmatpush1.msra.mxu0 %v584
    %638 = vmatprep.subr.mxu0 %v587
    %639 = vmatpush1.msra.mxu0 %v586
    %640 = vmatprep.subr.mxu0 %v589
    %641 = vmatpush1.msra.mxu0 %v588
    %642 = vmatprep.subr.mxu0 %v591
    %643 = vmatpush1.msra.mxu0 %v590
    %644 = vmatprep.subr.mxu0 %v593
    %645 = vmatpush1.msra.mxu0 %v592
    %646 = vmatprep.subr.mxu0 %v595
    %647 = vmatpush1.msra.mxu0 %v594
    %648 = vmatprep.subr.mxu0 %v597
    %649 = vmatpush1.msra.mxu0 %v596
    %650 = vmatprep.subr.mxu0 %v599
    %651 = vmatpush1.msra.mxu0 %v598
    %652 = vmatprep.subr.mxu0 %v601
    %653 = vmatpush1.msra.mxu0 %v600
    %654 = vmatprep.subr.mxu0 %v603
    %655 = vmatpush1.msra.mxu0 %v602
    %656 = vmatprep.subr.mxu0 %v605
    %657 = vmatpush1.msra.mxu0 %v604
    %658 = vmatprep.subr.mxu0 %v607
    %659 = vmatpush1.msra.mxu0 %v606
    %660 = vmatprep.subr.mxu0 0.0
    %661 = vmatpush1.msra.mxu0 0.0
    %662 = vmatprep.subr.mxu0 0.0
    %663 = vmatpush1.msra.mxu0 0.0
    %664 = vmatprep.subr.mxu0 0.0
    %665 = vmatpush1.msra.mxu0 0.0
    %666 = vmatprep.subr.mxu0 0.0
    %667 = vmatpush1.msra.mxu0 0.0
    %668 = vmatprep.subr.mxu0 0.0
    %669 = vmatpush1.msra.mxu0 0.0
    %670 = vmatprep.subr.mxu0 0.0
    %671 = vmatpush1.msra.mxu0 0.0
    %672 = vmatprep.subr.mxu0 0.0
    %673 = vmatpush1.msra.mxu0 0.0
    %674 = vmatprep.subr.mxu0 0.0
    %675 = vmatpush1.msra.mxu0 0.0
    %676 = vmatprep.mubr.f32.mxu0 %v608
    %677 = vmatmul.mubr.f32.gmra.mrb[0].mxu0 %v276
    %v678 = vpop.f32.mrb[0].mxu0
    %v679 = vadd.f32 0.0, %v678
    %v680 = vpop.f32.mrb[0].mxu0
    %v681 = vadd.f32 0.0, %v680
    %682 = vmatprep.mubr.f32.mxu0 %v610
    %683 = vmatmul.mubr.f32.gmra.mrb[0].mxu0 %v278
    %v684 = vpop.f32.mrb[0].mxu0
    %v685 = vadd.f32 0.0, %v684
    %v686 = vpop.f32.mrb[0].mxu0
    %v687 = vadd.f32 0.0, %v686
    %688 = vdwg.mxu0
    %v689 = vadd.f32 %v549, %v679
    %v690 = vadd.f32 %v551, %v681
    %v691 = vadd.f32 %v555, %v685
    %v692 = vadd.f32 %v557, %v687
    %v693 = vld [vmem:[%s3] sm:$0x3]
    %v695 = vlaneseq
    %v696 = vshrl.u32 %v695, 7
    %v697 = vsub.s32 0, %v696
    %v698 = vrot.slane %v693, %v697
    %v699 = vlaneseq
    %v700 = vshrl.u32 %v699, 7
    %v701 = vsub.s32 1, %v700
    %v702 = vrot.slane %v693, %v701
    %v705 = vadd.f32 %v689, %v698
    %v706 = vadd.f32 %v690, %v702
    %v707 = vadd.f32 %v691, %v698
    %v708 = vadd.f32 %v692, %v702
    %v709 = vmax.f32 %v705, 0.0
    %v710 = vmax.f32 %v706, 0.0
    %v711 = vmax.f32 %v707, 0.0
    %v712 = vmax.f32 %v708, 0.0
    %v715 = vrot.slane %v709, 1
    %v716 = vrot.slane %v710, 1
    %v719 = vmax.f32 %v709, %v715
    %v720 = vmax.f32 %v710, %v716
    %v721 = vrot.slane %v709, 2
    %v722 = vrot.slane %v710, 2
    %v725 = vmax.f32 %v719, %v721
    %v726 = vmax.f32 %v720, %v722
    %v729 = vrot.slane %v711, 1
    %v730 = vrot.slane %v712, 1
    %v733 = vmax.f32 %v711, %v729
    %v734 = vmax.f32 %v712, %v730
    %v735 = vrot.slane %v711, 2
    %v736 = vrot.slane %v712, 2
    %v739 = vmax.f32 %v733, %v735
    %v740 = vmax.f32 %v734, %v736
    %v743 = vrot.slane %v725, 1
    %v744 = vrot.slane %v726, 1
    %v747 = vrot.slane %v725, 2
    %v748 = vrot.slane %v726, 2
    %v753 = vrot.slane %v739, 5
    %v754 = vrot.slane %v740, 5
    %v757 = vrot.slane %v739, 6
    %v758 = vrot.slane %v740, 6
    %v761 = vrot.slane %v739, 7
    %v762 = vrot.slane %v740, 7
    %v765 = vsel %vm284, %v725, %v743
    %v766 = vsel %vm284, %v726, %v744
    %vm767 = vcmask 1041408
    %v768 = vsel %vm767, %v765, %v747
    %v769 = vsel %vm767, %v766, %v748
    %vm770 = vcmask 1042432
    %v771 = vsel %vm770, %v768, %v753
    %v772 = vsel %vm770, %v769, %v754
    %vm773 = vcmask 1043456
    %v774 = vsel %vm773, %v771, %v757
    %v775 = vsel %vm773, %v772, %v758
    %v776 = vsel %vm74, %v774, %v761
    %v777 = vsel %vm74, %v775, %v762
    %778 = vst [vmem:[%s4] sm:$0x3f] %v776
    %vm779 = vcmask 521216
    %780 = vst.msk [vmem:[%s4 + $0x8] sm:$0x3f] %vm779, %v777
    // Predicated region
    $region22: #{client_ptb_forward.1} parent=1 // pred_check
      _
    $region23: #{client_ptb_forward.1} parent=1 // pred_check_branch
      %782 = sbr.rel (0) target = $region25
    $region24: #{client_ptb_forward.1} parent=1 // pred_region
      _
    $region25: #{client_ptb_forward.1} parent=1 // pred_fallthru
      _
    // Predicated region
    $region26: #{client_ptb_forward.1} parent=1 // pred_check
      _
    $region27: #{client_ptb_forward.1} parent=1 // pred_check_branch
      %784 = sbr.rel (0) target = $region29
    $region28: #{client_ptb_forward.1} parent=1 // pred_region
      _
    $region29: #{client_ptb_forward.1} parent=1 // pred_fallthru
      _
    %785 = vsyncpa [#allocation3], 1

</llo_original>
